<compile_context>
chip_gen: v5e
topology: v5e:2x2
jax: 0.10.0
libtpu: 0.0.40
codegen_flags: <defaults>
</compile_context>

<pallas_src>
import functools
import math
import numpy as np

import jax
import jax.numpy as jnp
from jax import lax
from jax.experimental import pallas as pl
from jax.experimental.pallas import tpu as pltpu


# ----------------------------------------------------------------------------
# Hardware budget, tile selection, resident-operand specs, roll calibration
# ----------------------------------------------------------------------------

@functools.lru_cache(maxsize=None)
def _vmem_limit_bytes():
    """Per-kernel VMEM limit: ~75% of physical (~96 MiB v5e/v6e, ~48 MiB v7x)."""
    cap = None
    try:
        cap = int(pltpu.get_tpu_info().vmem_capacity_bytes)
    except Exception:
        cap = None
    if not cap:
        cap = 64 * 1024 * 1024          # conservative fallback (v7x-sized)
    return int(min(cap * 3 // 4, 112 * 1024 * 1024))


def _pick_tile(n, per_row_bytes, fixed_bytes, budget, cap=1024):
    """Largest sublane-friendly divisor of n whose VMEM estimate fits budget."""
    cands = sorted({t for t in range(1, min(n, cap) + 1)
                    if n % t == 0 and (t % 8 == 0 or t == n)}, reverse=True)
    if not cands:
        cands = [n]
    for t in cands:
        if fixed_bytes + t * per_row_bytes <= budget:
            return t
    return cands[-1]


def _const_spec(block_shape, index_map, single_buffer):
    """BlockSpec for an operand whose block never changes across the grid."""
    if single_buffer:
        return pl.BlockSpec(block_shape, index_map,
                            pipeline_mode=pl.Buffered(buffer_count=1))
    return pl.BlockSpec(block_shape, index_map)


@functools.lru_cache(maxsize=None)
def _roll_mode():
    """Calibrate pltpu.roll's rotation direction once with a tiny kernel."""
    try:
        def k(x_ref, o_ref):
            o_ref[...] = pltpu.roll(x_ref[...], 1, 1)
        x = jnp.broadcast_to(jnp.arange(128, dtype=jnp.float32), (8, 128))
        y = np.asarray(pl.pallas_call(
            k, out_shape=jax.ShapeDtypeStruct((8, 128), jnp.float32))(x))
        if float(y[0, 1]) == 0.0:   # matches np.roll (elements move to higher idx)
            return "numpy"
        if float(y[0, 0]) == 1.0:   # opposite convention (elements move lower)
            return "inverse"
    except Exception:
        pass
    return "concat"  # TODO(synk): concatenate fallback if pltpu.roll unavailable


# ----------------------------------------------------------------------------
# Pallas kernels
# ----------------------------------------------------------------------------

def _ln_qkv_kernel(x_ref, g_ref, b_ref, w_ref, wb_ref, q_ref, k_ref, v_ref, *,
                   do_norm):
    # x: [TN, D] f32, g/b: [1, D] f32, w: [D, 3D] bf16, wb: [1, 3D] f32
    x = x_ref[...]
    if do_norm:
        mu = jnp.mean(x, axis=-1, keepdims=True)
        var = jnp.mean((x - mu) ** 2, axis=-1, keepdims=True)
        x = (x - mu) * lax.rsqrt(var + 1e-5) * g_ref[...] + b_ref[...]
    y = jnp.dot(x.astype(jnp.bfloat16), w_ref[...],
                preferred_element_type=jnp.float32) + wb_ref[...]   # [TN, 3D] f32
    D = q_ref.shape[1]
    q_ref[...] = y[:, :D].astype(q_ref.dtype)
    k_ref[...] = y[:, D:2 * D].astype(k_ref.dtype)
    v_ref[...] = y[:, 2 * D:].astype(v_ref.dtype)


def _linear_kernel(x_ref, w_ref, b_ref, o_ref):
    # o = x @ w_t + b     x: [TN, Din] f32, w_t: [Din, Dout] bf16, b: [1, Dout]
    y = jnp.dot(x_ref[...].astype(jnp.bfloat16), w_ref[...],
                preferred_element_type=jnp.float32) + b_ref[...]
    o_ref[...] = y.astype(o_ref.dtype)


def _rel_attn_kernel(q_ref, k_ref, v_ref, r_ref, *rest, n_head, scale,
                     add_residual, roll_mode):
    # Per (batch, q-tile) block:
    #   q: [tq, D] bf16 (head-grouped cols), k/v: [T, D] bf16, r: [W, D] bf16,
    #   res: [tq, D] f32 (only if add_residual), rw/rr: [1, D] f32,
    #   wo: [D, D] bf16, bo: [1, D] f32.
    # Outputs: out [tq, D] f32 (final, out_proj fused), cov [H, tq, T].
    if add_residual:
        res_ref, rw_ref, rr_ref, wo_ref, bo_ref, out_ref, cov_ref, ctx_sc = rest
    else:
        rw_ref, rr_ref, wo_ref, bo_ref, out_ref, cov_ref, ctx_sc = rest
        res_ref = None

    tq, D = q_ref.shape
    T = k_ref.shape[0]
    W = r_ref.shape[0]            # padded relative-position width (mult. of 128)
    H = n_head
    Dh = D // H
    sc = 1.0 / math.sqrt(Dh)

    q = q_ref[...].astype(jnp.float32)
    rw_q = ((q + rw_ref[...]) * sc).astype(jnp.bfloat16)   # scale folded into query
    rr_q = ((q + rr_ref[...]) * sc).astype(jnp.bfloat16)
    k = k_ref[...]
    v = v_ref[...]
    r = r_ref[...]

    # Per-row left-roll amounts for the relative shift: global row i -> (T-1)-i.
    q0 = pl.program_id(1) * tq
    row = q0 + lax.broadcasted_iota(jnp.int32, (tq, 1), 0)
    lshift = (T - 1) - row
    nbits = (T - 1).bit_length()
    # Per-bit selection masks, built once (not once per head), lane-broadcast.
    masks = [jnp.broadcast_to((lshift & (1 << b)) != 0, (tq, W))
             for b in range(nbits)]

    for h in range(H):
        sl = slice(h * Dh, (h + 1) * Dh)
        # AC term: (q + r_w_bias) @ k^T
        ac = lax.dot_general(rw_q[:, sl], k[:, sl], (((1,), (1,)), ((), ())),
                             preferred_element_type=jnp.float32)        # [tq, T]
        # BD term before shift: (q + r_r_bias) @ r^T
        bd = lax.dot_general(rr_q[:, sl], r[:, sl], (((1,), (1,)), ((), ())),
                             preferred_element_type=jnp.float32)        # [tq, W]
        # Relative shift: bd[i, j] <- bd[i, j + (T-1) - i], as a log2(T)-step
        # skew of per-row-selected circular left rolls (kept columns never wrap,
        # and never read the padded columns >= Lr).
        for b in range(nbits):
            step = 1 << b
            if roll_mode == "concat":
                rolled = jnp.concatenate([bd[:, step:], bd[:, :step]], axis=1)
            else:
                amt = (W - step) if roll_mode == "numpy" else step
                rolled = pltpu.roll(bd, amt, axis=1)   # XLU lane rotate (left by step)
            bd = jnp.where(masks[b], rolled, bd)
        score = ac + bd[:, :T]
        score = score - jnp.max(score, axis=-1, keepdims=True)
        p = jnp.exp(score)
        # exact reciprocal so returned coverage rows sum to 1
        p = p * pl.reciprocal(jnp.sum(p, axis=-1, keepdims=True))
        cov_ref[h, :, :] = p.astype(cov_ref.dtype)
        # store this head's context straight into the lane-dense slab
        ctx_sc[:, sl] = jnp.dot(p.astype(jnp.bfloat16), v[:, sl],
                                preferred_element_type=jnp.float32)

    # fused out_proj (+ *scale, + residual) on the [tq, D] context slab
    y = jnp.dot(ctx_sc[...].astype(jnp.bfloat16), wo_ref[...],
                preferred_element_type=jnp.float32) + bo_ref[...]
    y = y * scale
    if add_residual:
        y = y + res_ref[...]
    out_ref[...] = y.astype(out_ref.dtype)


# ----------------------------------------------------------------------------
# pallas_call wrappers
# ----------------------------------------------------------------------------

def ln_qkv_pallas(x2d, gamma, beta, w3_t, b3, do_norm, single_buffer):
    N, D = x2d.shape
    D3 = w3_t.shape[1]
    vlim = _vmem_limit_bytes()
    fixed = D * D3 * 2 * (1 if single_buffer else 2) + D3 * 4 * 2 + 4 * D * 4
    per_row = 2 * D * 4 + 3 * 2 * D * 2 + 3 * D * 4 + 2 * D * 4
    tn = _pick_tile(N, per_row, fixed, int(vlim * 0.9), cap=1024)
    shape = jax.ShapeDtypeStruct((N, D), jnp.bfloat16)
    return pl.pallas_call(
        functools.partial(_ln_qkv_kernel, do_norm=do_norm),
        grid=(N // tn,),
        in_specs=[pl.BlockSpec((tn, D), lambda i: (i, 0)),
                  _const_spec((1, D), lambda i: (0, 0), single_buffer),
                  _const_spec((1, D), lambda i: (0, 0), single_buffer),
                  _const_spec((D, D3), lambda i: (0, 0), single_buffer),
                  _const_spec((1, D3), lambda i: (0, 0), single_buffer)],
        out_specs=(pl.BlockSpec((tn, D), lambda i: (i, 0)),) * 3,
        out_shape=(shape, shape, shape),
        compiler_params=pltpu.CompilerParams(
            dimension_semantics=("parallel",),
            vmem_limit_bytes=vlim),
    )(x2d, gamma.reshape(1, D), beta.reshape(1, D), w3_t, b3.reshape(1, D3))


def linear_pallas(x2d, w_t, b, single_buffer, out_dtype=jnp.bfloat16):
    N, Din = x2d.shape
    Dout = w_t.shape[1]
    vlim = _vmem_limit_bytes()
    fixed = Din * Dout * 2 * (1 if single_buffer else 2) + Dout * 4 * 2
    per_row = 2 * Din * 4 + 2 * Dout * 2 + 2 * Dout * 4
    tn = _pick_tile(N, per_row, fixed, int(vlim * 0.9), cap=1024)
    return pl.pallas_call(
        _linear_kernel,
        grid=(N // tn,),
        in_specs=[pl.BlockSpec((tn, Din), lambda i: (i, 0)),
                  _const_spec((Din, Dout), lambda i: (0, 0), single_buffer),
                  _const_spec((1, Dout), lambda i: (0, 0), single_buffer)],
        out_specs=pl.BlockSpec((tn, Dout), lambda i: (i, 0)),
        out_shape=jax.ShapeDtypeStruct((N, Dout), out_dtype),
        compiler_params=pltpu.CompilerParams(
            dimension_semantics=("parallel",),
            vmem_limit_bytes=vlim),
    )(x2d, w_t, b.reshape(1, Dout))


def rel_attention_pallas(q3, k3, v3, r3, x_res, rw_flat, rr_flat, wo_t, bo,
                         n_head, scale, add_residual, cov_dtype, single_buffer):
    B, T, D = q3.shape
    Bp, W, _ = r3.shape
    H = n_head
    vlim = _vmem_limit_bytes()
    cov_bytes = jnp.dtype(cov_dtype).itemsize

    # resident-per-batch operands (k/v/r/w_out) + per-q-row footprint
    fixed = (2 * 2 * T * D * 2                     # k, v (bf16, double-buffered)
             + 2 * W * D * 2                       # r (bf16, double-buffered)
             + D * D * 2 * (1 if single_buffer else 2)   # out_proj weight
             + 4 * D * 4)                          # rw / rr / out bias
    per_row = (2 * D * 2                           # q (bf16, 2-buf)
               + 2 * D * 4 + 2 * D * 4             # residual in + final out (f32, 2-buf)
               + D * 4                             # ctx scratch
               + 6 * W * 4                         # bd / rolled / mask / score temps
               + 2 * H * T * cov_bytes)            # cov (2-buf)
    tq = _pick_tile(T, per_row, fixed, int(vlim * 0.85), cap=512)
    nqt = T // tq

    roll_mode = _roll_mode()
    r_index = (lambda b, i: (b, 0, 0)) if Bp == B else (lambda b, i: (0, 0, 0))

    in_specs = [pl.BlockSpec((None, tq, D), lambda b, i: (b, i, 0)),
                pl.BlockSpec((None, T, D), lambda b, i: (b, 0, 0)),
                pl.BlockSpec((None, T, D), lambda b, i: (b, 0, 0)),
                pl.BlockSpec((None, W, D), r_index)]
    inputs = [q3, k3, v3, r3]
    if add_residual:
        in_specs.append(pl.BlockSpec((None, tq, D), lambda b, i: (b, i, 0)))
        inputs.append(x_res)
    in_specs += [_const_spec((1, D), lambda b, i: (0, 0), single_buffer),
                 _const_spec((1, D), lambda b, i: (0, 0), single_buffer),
                 _const_spec((D, D), lambda b, i: (0, 0), single_buffer),
                 _const_spec((1, D), lambda b, i: (0, 0), single_buffer)]
    inputs += [rw_flat, rr_flat, wo_t, bo.reshape(1, D)]

    kernel = functools.partial(_rel_attn_kernel, n_head=H, scale=scale,
                               add_residual=add_residual, roll_mode=roll_mode)
    return pl.pallas_call(
        kernel,
        grid=(B, nqt),
        in_specs=in_specs,
        out_specs=(pl.BlockSpec((None, tq, D), lambda b, i: (b, i, 0)),
                   pl.BlockSpec((None, H, tq, T), lambda b, i: (b, 0, i, 0))),
        out_shape=(jax.ShapeDtypeStruct((B, T, D), jnp.float32),
                   jax.ShapeDtypeStruct((B, H, T, T), cov_dtype)),
        scratch_shapes=[pltpu.VMEM((tq, D), jnp.float32)],
        compiler_params=pltpu.CompilerParams(
            dimension_semantics=("parallel", "parallel"),
            vmem_limit_bytes=vlim),
    )(*inputs)


# ----------------------------------------------------------------------------
# Module forward (glue = one transpose each way + pad + free reshapes)
# ----------------------------------------------------------------------------

def _forward_impl(q, pos, params, n_head, d_k, scale, norm, res, cov_dtype,
                  single_buffer):
    T, B, D = q.shape
    Lr, Bp = pos.shape[0], pos.shape[1]
    H, Dh = n_head, d_k
    assert H * Dh == D, 'd_model must be divisible by n_head'
    assert Lr == 2 * T - 1, 'expect bidirectional relative positions (Lr = 2T-1)'
    assert Bp in (1, B), 'pos batch dim must be 1 or match q'

    # pad the relative-position axis to a lane-aligned width; the shift never
    # reads the padded columns for the kept T output columns, so this is exact.
    W = ((Lr + 127) // 128) * 128

    # one-time parameter re-layout: head-grouped q/k/v cols, [Din, Dout], bf16
    w_in = params['in_proj_weight'].reshape(H, 3, Dh, D)
    w3_t = jnp.concatenate([w_in[:, 0].reshape(D, D).T,
                            w_in[:, 1].reshape(D, D).T,
                            w_in[:, 2].reshape(D, D).T], axis=1).astype(jnp.bfloat16)
    b_in = params['in_proj_bias'].reshape(H, 3, Dh)
    b3 = jnp.concatenate([b_in[:, 0].reshape(D), b_in[:, 1].reshape(D),
                          b_in[:, 2].reshape(D)], axis=0)
    w_pos_t = params['pos_proj_weight'].T.astype(jnp.bfloat16)
    w_out_t = params['out_proj_weight'].T.astype(jnp.bfloat16)
    rw_flat = params['r_w_bias'].reshape(1, D).astype(jnp.float32)
    rr_flat = params['r_r_bias'].reshape(1, D).astype(jnp.float32)

    # sequence-first -> batch-first once; all later reshapes are free
    x_btd = jnp.transpose(q, (1, 0, 2))                        # [B, T, D]
    x2d = x_btd.reshape(B * T, D)
    pos_b = jnp.transpose(pos, (1, 0, 2))                      # [Bp, Lr, D]
    pos_b = jnp.pad(pos_b, ((0, 0), (0, W - Lr), (0, 0)))      # [Bp, W, D]
    pos2d = pos_b.reshape(Bp * W, D)

    # fused LayerNorm + in_proj -> q/k/v [B*T, D] bf16 (head-grouped columns)
    q2d, k2d, v2d = ln_qkv_pallas(x2d, params['ln_g'], params['ln_b'],
                                  w3_t, b3, norm, single_buffer)
    # pos projection (padded rows are harmless: never read by the shift);
    # batch-invariant pos (Bp == 1) is projected once and reused.
    r2d = linear_pallas(pos2d, w_pos_t, params['pos_proj_bias'], single_buffer)

    # relative attention with fused out_proj * scale (+ residual)
    out_btd, cov = rel_attention_pallas(
        q2d.reshape(B, T, D), k2d.reshape(B, T, D), v2d.reshape(B, T, D),
        r2d.reshape(Bp, W, D), x_btd, rw_flat, rr_flat, w_out_t,
        params['out_proj_bias'], H, scale, res, cov_dtype, single_buffer)

    out = jnp.transpose(out_btd, (1, 0, 2))                    # back to [T, B, D]
    return out, cov                                            # cov: [B, H, T, T]


def relative_self_mha_forward(q, pos, params, n_head, d_k, scale=1.0,
                              norm=True, res=True, cov_dtype=jnp.float32):
    try:
        return _forward_impl(q, pos, params, n_head, d_k, scale, norm, res,
                             cov_dtype, single_buffer=True)
    except Exception:
        # pl.Buffered(1) (single-buffered resident weights) unsupported on this
        # jax/libtpu combination -> retry with default double buffering.
        return _forward_impl(q, pos, params, n_head, d_k, scale, norm, res,
                             cov_dtype, single_buffer=False)


# ----------------------------------------------------------------------------
# Pure-JAX reference (mirrors the PyTorch relative_self_attn_func exactly)
# ----------------------------------------------------------------------------

def _rel_shift_ref(x):
    B, H, T, Lr = x.shape
    zero_pad = jnp.zeros((B, H, T, 1), x.dtype)
    x_padded = jnp.concatenate([zero_pad, x], axis=-1)
    x_view = x_padded.reshape(B, H, Lr + 1, T)
    return x_view[:, :, 1:, :].reshape(B, H, T, Lr)


def reference_forward(q, pos, params, n_head, d_k, scale=1.0):
    T, B, D = q.shape
    Lr = pos.shape[0]
    H, Dh = n_head, d_k
    residual = q
    mu = jnp.mean(q, -1, keepdims=True)
    var = jnp.mean((q - mu) ** 2, -1, keepdims=True)
    x = (q - mu) / jnp.sqrt(var + 1e-5) * params['ln_g'] + params['ln_b']

    lin = (x @ params['in_proj_weight'].T + params['in_proj_bias'])
    lin = lin.reshape(T, B, H, 3, Dh)
    qh, kh, vh = lin[..., 0, :], lin[..., 1, :], lin[..., 2, :]
    rh = (pos @ params['pos_proj_weight'].T +
          params['pos_proj_bias']).reshape(Lr, B, H, Dh)

    sc = 1.0 / math.sqrt(Dh)
    rw_q = qh + params['r_w_bias']
    rr_q = qh + params['r_r_bias']
    ac = jnp.einsum('tbhd,sbhd->bhts', rw_q, kh) * sc
    bd_full = jnp.einsum('tbhd,lbhd->bhtl', rr_q, rh) * sc
    bd = _rel_shift_ref(bd_full)[..., :T]
    score = ac + bd
    p = jax.nn.softmax(score, axis=-1)
    ctx = jnp.einsum('bhts,sbhd->tbhd', p, vh).reshape(T, B, D)
    out = ctx @ params['out_proj_weight'].T + params['out_proj_bias']
    out = out * scale + residual
    return out, p


# ----------------------------------------------------------------------------

if __name__ == "__main__":
    n_head, d_k = 4, 8
    d_model = n_head * d_k          # 32
    T, B = 8, 2
    Lr = 2 * T - 1                  # bidirectional relative positions

    std_ = math.sqrt(2.0 / (d_model + d_model))
    ks = jax.random.split(jax.random.PRNGKey(0), 8)
    params = {
        'in_proj_weight':  std_ * jax.random.normal(ks[0], (3 * d_model, d_model), jnp.float32),
        'out_proj_weight': std_ * jax.random.normal(ks[1], (d_model, d_model), jnp.float32),
        'pos_proj_weight': std_ * jax.random.normal(ks[2], (d_model, d_model), jnp.float32),
        'in_proj_bias':  jnp.zeros((3 * d_model,), jnp.float32),
        'out_proj_bias': jnp.zeros((d_model,), jnp.float32),
        'pos_proj_bias': jnp.zeros((d_model,), jnp.float32),
        'r_w_bias': std_ * jax.random.normal(ks[3], (n_head, d_k), jnp.float32),
        'r_r_bias': std_ * jax.random.normal(ks[4], (n_head, d_k), jnp.float32),
        'ln_g': jnp.ones((d_model,), jnp.float32),
        'ln_b': jnp.zeros((d_model,), jnp.float32),
    }

    q = jax.random.normal(ks[5], (T, B, d_model), jnp.float32)
    pos = jax.random.normal(ks[6], (Lr, B, d_model), jnp.float32)

    out, cov = relative_self_mha_forward(q, pos, params, n_head, d_k, scale=1.0)
    (out, cov) = jax.block_until_ready((out, cov))

    ref_out, ref_cov = reference_forward(q, pos, params, n_head, d_k, scale=1.0)
    # bf16 MXU operands (f32 accumulation) -> slightly looser tolerance than pure f32
    err_out = np.max(np.abs(np.asarray(out) - np.asarray(ref_out)))
    err_cov = np.max(np.abs(np.asarray(cov) - np.asarray(ref_cov)))
    assert np.allclose(np.asarray(out), np.asarray(ref_out), atol=8e-2, rtol=5e-2), err_out
    assert np.allclose(np.asarray(cov), np.asarray(ref_cov), atol=3e-2, rtol=5e-2), err_cov

    print("KERNEL_OK")
</pallas_src>

<mosaic_0001>
module attributes {stable_mosaic.version = 11 : i64} {
  func.func @_ln_qkv_kernel(%arg0: i32, %arg1: memref<16x32xf32, #tpu.memory_space<vmem>>, %arg2: memref<1x32xf32, #tpu.memory_space<vmem>>, %arg3: memref<1x32xf32, #tpu.memory_space<vmem>>, %arg4: memref<32x96xbf16, #tpu.memory_space<vmem>>, %arg5: memref<1x96xf32, #tpu.memory_space<vmem>>, %arg6: memref<16x32xbf16, #tpu.memory_space<vmem>>, %arg7: memref<16x32xbf16, #tpu.memory_space<vmem>>, %arg8: memref<16x32xbf16, #tpu.memory_space<vmem>>) attributes {dimension_semantics = [#tpu.dimension_semantics<parallel>], iteration_bounds = array<i64: 1>, scalar_prefetch = 0 : i64, scratch_operands = 0 : i64, tpu.core_type = #tpu.core_type<tc>, window_params = [{transform_indices = @transform_0, window_bounds = array<i64: 16, 32>}, {pipeline_mode = #tpu.pipeline_mode<synchronous>, transform_indices = @transform_1, window_bounds = array<i64: 1, 32>}, {pipeline_mode = #tpu.pipeline_mode<synchronous>, transform_indices = @transform_2, window_bounds = array<i64: 1, 32>}, {pipeline_mode = #tpu.pipeline_mode<synchronous>, transform_indices = @transform_3, window_bounds = array<i64: 32, 96>}, {pipeline_mode = #tpu.pipeline_mode<synchronous>, transform_indices = @transform_4, window_bounds = array<i64: 1, 96>}, {transform_indices = @transform_5, window_bounds = array<i64: 16, 32>}, {transform_indices = @transform_6, window_bounds = array<i64: 16, 32>}, {transform_indices = @transform_7, window_bounds = array<i64: 16, 32>}]} {
    %c0 = arith.constant 0 : index
    %c0_0 = arith.constant 0 : index
    %0 = vector.load %arg1[%c0, %c0_0] : memref<16x32xf32, #tpu.memory_space<vmem>>, vector<16x32xf32>
    %cst = arith.constant dense<0.000000e+00> : vector<16xf32>
    %1 = vector.multi_reduction <add>, %0, %cst [1] : vector<16x32xf32> to vector<16xf32>
    %2 = vector.shape_cast %1 : vector<16xf32> to vector<16x1xf32>
    %cst_1 = arith.constant 3.200000e+01 : f32
    %3 = vector.broadcast %cst_1 : f32 to vector<16x1xf32>
    %4 = arith.divf %2, %3 : vector<16x1xf32>
    %5 = vector.broadcast %4 : vector<16x1xf32> to vector<16x32xf32>
    %6 = arith.subf %0, %5 : vector<16x32xf32>
    %7 = arith.mulf %6, %6 : vector<16x32xf32>
    %cst_2 = arith.constant dense<0.000000e+00> : vector<16xf32>
    %8 = vector.multi_reduction <add>, %7, %cst_2 [1] : vector<16x32xf32> to vector<16xf32>
    %9 = vector.shape_cast %8 : vector<16xf32> to vector<16x1xf32>
    %cst_3 = arith.constant 3.200000e+01 : f32
    %10 = vector.broadcast %cst_3 : f32 to vector<16x1xf32>
    %11 = arith.divf %9, %10 : vector<16x1xf32>
    %12 = vector.broadcast %4 : vector<16x1xf32> to vector<16x32xf32>
    %13 = arith.subf %0, %12 : vector<16x32xf32>
    %cst_4 = arith.constant 9.99999974E-6 : f32
    %14 = vector.broadcast %cst_4 : f32 to vector<16x1xf32>
    %15 = arith.addf %11, %14 : vector<16x1xf32>
    %16 = math.rsqrt %15 : vector<16x1xf32>
    %17 = vector.broadcast %16 : vector<16x1xf32> to vector<16x32xf32>
    %18 = arith.mulf %13, %17 : vector<16x32xf32>
    %c0_5 = arith.constant 0 : index
    %c0_6 = arith.constant 0 : index
    %19 = vector.load %arg2[%c0_5, %c0_6] : memref<1x32xf32, #tpu.memory_space<vmem>>, vector<1x32xf32>
    %20 = vector.broadcast %19 : vector<1x32xf32> to vector<16x32xf32>
    %21 = arith.mulf %18, %20 : vector<16x32xf32>
    %c0_7 = arith.constant 0 : index
    %c0_8 = arith.constant 0 : index
    %22 = vector.load %arg3[%c0_7, %c0_8] : memref<1x32xf32, #tpu.memory_space<vmem>>, vector<1x32xf32>
    %23 = vector.broadcast %22 : vector<1x32xf32> to vector<16x32xf32>
    %24 = arith.addf %21, %23 : vector<16x32xf32>
    %25 = arith.truncf %24 : vector<16x32xf32> to vector<16x32xbf16>
    %c0_9 = arith.constant 0 : index
    %c0_10 = arith.constant 0 : index
    %26 = vector.load %arg4[%c0_9, %c0_10] : memref<32x96xbf16, #tpu.memory_space<vmem>>, vector<32x96xbf16>
    %cst_11 = arith.constant dense<0.000000e+00> : vector<16x96xf32>
    %27 = tpu.matmul %25, %26, %cst_11 {dimension_numbers = #tpu.dot_dimension_numbers<[1], [0], [0], [1], [0, 0, 1, 1], [], []>} : vector<16x32xbf16>, vector<32x96xbf16>, vector<16x96xf32> -> vector<16x96xf32>
    %c0_12 = arith.constant 0 : index
    %c0_13 = arith.constant 0 : index
    %28 = vector.load %arg5[%c0_12, %c0_13] : memref<1x96xf32, #tpu.memory_space<vmem>>, vector<1x96xf32>
    %29 = vector.broadcast %28 : vector<1x96xf32> to vector<16x96xf32>
    %30 = arith.addf %27, %29 : vector<16x96xf32>
    %31 = vector.extract_strided_slice %30 {offsets = [0, 0], sizes = [16, 32], strides = [1, 1]} : vector<16x96xf32> to vector<16x32xf32>
    %32 = arith.truncf %31 : vector<16x32xf32> to vector<16x32xbf16>
    %c0_14 = arith.constant 0 : index
    %c0_15 = arith.constant 0 : index
    %33 = vector.load %arg6[%c0_14, %c0_15] : memref<16x32xbf16, #tpu.memory_space<vmem>>, vector<16x32xbf16>
    tpu.vector_store %arg6[%c0_14, %c0_15], %32 {strides = array<i32>} : memref<16x32xbf16, #tpu.memory_space<vmem>>, vector<16x32xbf16>,
    %34 = vector.extract_strided_slice %30 {offsets = [0, 32], sizes = [16, 32], strides = [1, 1]} : vector<16x96xf32> to vector<16x32xf32>
    %35 = arith.truncf %34 : vector<16x32xf32> to vector<16x32xbf16>
    %c0_16 = arith.constant 0 : index
    %c0_17 = arith.constant 0 : index
    %36 = vector.load %arg7[%c0_16, %c0_17] : memref<16x32xbf16, #tpu.memory_space<vmem>>, vector<16x32xbf16>
    tpu.vector_store %arg7[%c0_16, %c0_17], %35 {strides = array<i32>} : memref<16x32xbf16, #tpu.memory_space<vmem>>, vector<16x32xbf16>,
    %37 = vector.extract_strided_slice %30 {offsets = [0, 64], sizes = [16, 32], strides = [1, 1]} : vector<16x96xf32> to vector<16x32xf32>
    %38 = arith.truncf %37 : vector<16x32xf32> to vector<16x32xbf16>
    %c0_18 = arith.constant 0 : index
    %c0_19 = arith.constant 0 : index
    %39 = vector.load %arg8[%c0_18, %c0_19] : memref<16x32xbf16, #tpu.memory_space<vmem>>, vector<16x32xbf16>
    tpu.vector_store %arg8[%c0_18, %c0_19], %38 {strides = array<i32>} : memref<16x32xbf16, #tpu.memory_space<vmem>>, vector<16x32xbf16>,
    return
  }
  func.func @transform_0(%arg0: i32) -> (i32, i32) {
    %c0_i32 = arith.constant 0 : i32
    %c0_i32_0 = arith.constant 0 : i32
    return %arg0, %c0_i32 : i32, i32
  }
  func.func @transform_1(%arg0: i32) -> (i32, i32) {
    %c0_i32 = arith.constant 0 : i32
    %c0_i32_0 = arith.constant 0 : i32
    %c0_i32_1 = arith.constant 0 : i32
    return %c0_i32, %c0_i32_0 : i32, i32
  }
  func.func @transform_2(%arg0: i32) -> (i32, i32) {
    %c0_i32 = arith.constant 0 : i32
    %c0_i32_0 = arith.constant 0 : i32
    %c0_i32_1 = arith.constant 0 : i32
    return %c0_i32, %c0_i32_0 : i32, i32
  }
  func.func @transform_3(%arg0: i32) -> (i32, i32) {
    %c0_i32 = arith.constant 0 : i32
    %c0_i32_0 = arith.constant 0 : i32
    %c0_i32_1 = arith.constant 0 : i32
    return %c0_i32, %c0_i32_0 : i32, i32
  }
  func.func @transform_4(%arg0: i32) -> (i32, i32) {
    %c0_i32 = arith.constant 0 : i32
    %c0_i32_0 = arith.constant 0 : i32
    %c0_i32_1 = arith.constant 0 : i32
    return %c0_i32, %c0_i32_0 : i32, i32
  }
  func.func @transform_5(%arg0: i32) -> (i32, i32) {
    %c0_i32 = arith.constant 0 : i32
    %c0_i32_0 = arith.constant 0 : i32
    return %arg0, %c0_i32 : i32, i32
  }
  func.func @transform_6(%arg0: i32) -> (i32, i32) {
    %c0_i32 = arith.constant 0 : i32
    %c0_i32_0 = arith.constant 0 : i32
    return %arg0, %c0_i32 : i32, i32
  }
  func.func @transform_7(%arg0: i32) -> (i32, i32) {
    %c0_i32 = arith.constant 0 : i32
    %c0_i32_0 = arith.constant 0 : i32
    return %arg0, %c0_i32 : i32, i32
  }
}

module attributes {stable_mosaic.version = 11 : i64} {
  func.func @_ln_qkv_kernel(%arg0: i32, %arg1: memref<16x32xf32, #tpu.memory_space<vmem>>, %arg2: memref<1x32xf32, #tpu.memory_space<vmem>>, %arg3: memref<1x32xf32, #tpu.memory_space<vmem>>, %arg4: memref<32x96xbf16, #tpu.memory_space<vmem>>, %arg5: memref<1x96xf32, #tpu.memory_space<vmem>>, %arg6: memref<16x32xbf16, #tpu.memory_space<vmem>>, %arg7: memref<16x32xbf16, #tpu.memory_space<vmem>>, %arg8: memref<16x32xbf16, #tpu.memory_space<vmem>>) attributes {dimension_semantics = [#tpu.dimension_semantics<parallel>], iteration_bounds = array<i64: 1>, scalar_prefetch = 0 : i64, scratch_operands = 0 : i64, tpu.core_type = #tpu.core_type<tc>, window_params = [{transform_indices = @transform_0, window_bounds = array<i64: 16, 32>}, {pipeline_mode = #tpu.pipeline_mode<synchronous>, transform_indices = @transform_1, window_bounds = array<i64: 1, 32>}, {pipeline_mode = #tpu.pipeline_mode<synchronous>, transform_indices = @transform_2, window_bounds = array<i64: 1, 32>}, {pipeline_mode = #tpu.pipeline_mode<synchronous>, transform_indices = @transform_3, window_bounds = array<i64: 32, 96>}, {pipeline_mode = #tpu.pipeline_mode<synchronous>, transform_indices = @transform_4, window_bounds = array<i64: 1, 96>}, {transform_indices = @transform_5, window_bounds = array<i64: 16, 32>}, {transform_indices = @transform_6, window_bounds = array<i64: 16, 32>}, {transform_indices = @transform_7, window_bounds = array<i64: 16, 32>}]} {
    %c0 = arith.constant 0 : index
    %c0_0 = arith.constant 0 : index
    %0 = vector.load %arg1[%c0, %c0_0] : memref<16x32xf32, #tpu.memory_space<vmem>>, vector<16x32xf32>
    %cst = arith.constant dense<0.000000e+00> : vector<16xf32>
    %1 = vector.multi_reduction <add>, %0, %cst [1] : vector<16x32xf32> to vector<16xf32>
    %2 = vector.shape_cast %1 : vector<16xf32> to vector<16x1xf32>
    %cst_1 = arith.constant 3.200000e+01 : f32
    %3 = vector.broadcast %cst_1 : f32 to vector<16x1xf32>
    %4 = arith.divf %2, %3 : vector<16x1xf32>
    %5 = vector.broadcast %4 : vector<16x1xf32> to vector<16x32xf32>
    %6 = arith.subf %0, %5 : vector<16x32xf32>
    %7 = arith.mulf %6, %6 : vector<16x32xf32>
    %cst_2 = arith.constant dense<0.000000e+00> : vector<16xf32>
    %8 = vector.multi_reduction <add>, %7, %cst_2 [1] : vector<16x32xf32> to vector<16xf32>
    %9 = vector.shape_cast %8 : vector<16xf32> to vector<16x1xf32>
    %cst_3 = arith.constant 3.200000e+01 : f32
    %10 = vector.broadcast %cst_3 : f32 to vector<16x1xf32>
    %11 = arith.divf %9, %10 : vector<16x1xf32>
    %12 = vector.broadcast %4 : vector<16x1xf32> to vector<16x32xf32>
    %13 = arith.subf %0, %12 : vector<16x32xf32>
    %cst_4 = arith.constant 9.99999974E-6 : f32
    %14 = vector.broadcast %cst_4 : f32 to vector<16x1xf32>
    %15 = arith.addf %11, %14 : vector<16x1xf32>
    %16 = math.rsqrt %15 : vector<16x1xf32>
    %17 = vector.broadcast %16 : vector<16x1xf32> to vector<16x32xf32>
    %18 = arith.mulf %13, %17 : vector<16x32xf32>
    %c0_5 = arith.constant 0 : index
    %c0_6 = arith.constant 0 : index
    %19 = vector.load %arg2[%c0_5, %c0_6] : memref<1x32xf32, #tpu.memory_space<vmem>>, vector<1x32xf32>
    %20 = vector.broadcast %19 : vector<1x32xf32> to vector<16x32xf32>
    %21 = arith.mulf %18, %20 : vector<16x32xf32>
    %c0_7 = arith.constant 0 : index
    %c0_8 = arith.constant 0 : index
    %22 = vector.load %arg3[%c0_7, %c0_8] : memref<1x32xf32, #tpu.memory_space<vmem>>, vector<1x32xf32>
    %23 = vector.broadcast %22 : vector<1x32xf32> to vector<16x32xf32>
    %24 = arith.addf %21, %23 : vector<16x32xf32>
    %25 = arith.truncf %24 : vector<16x32xf32> to vector<16x32xbf16>
    %c0_9 = arith.constant 0 : index
    %c0_10 = arith.constant 0 : index
    %26 = vector.load %arg4[%c0_9, %c0_10] : memref<32x96xbf16, #tpu.memory_space<vmem>>, vector<32x96xbf16>
    %cst_11 = arith.constant dense<0.000000e+00> : vector<16x96xf32>
    %27 = tpu.matmul %25, %26, %cst_11 {dimension_numbers = #tpu.dot_dimension_numbers<[1], [0], [0], [1], [0, 0, 1, 1], [], []>} : vector<16x32xbf16>, vector<32x96xbf16>, vector<16x96xf32> -> vector<16x96xf32>
    %c0_12 = arith.constant 0 : index
    %c0_13 = arith.constant 0 : index
    %28 = vector.load %arg5[%c0_12, %c0_13] : memref<1x96xf32, #tpu.memory_space<vmem>>, vector<1x96xf32>
    %29 = vector.broadcast %28 : vector<1x96xf32> to vector<16x96xf32>
    %30 = arith.addf %27, %29 : vector<16x96xf32>
    %31 = vector.extract_strided_slice %30 {offsets = [0, 0], sizes = [16, 32], strides = [1, 1]} : vector<16x96xf32> to vector<16x32xf32>
    %32 = arith.truncf %31 : vector<16x32xf32> to vector<16x32xbf16>
    %c0_14 = arith.constant 0 : index
    %c0_15 = arith.constant 0 : index
    %33 = vector.load %arg6[%c0_14, %c0_15] : memref<16x32xbf16, #tpu.memory_space<vmem>>, vector<16x32xbf16>
    tpu.vector_store %arg6[%c0_14, %c0_15], %32 {strides = array<i32>} : memref<16x32xbf16, #tpu.memory_space<vmem>>, vector<16x32xbf16>,
    %34 = vector.extract_strided_slice %30 {offsets = [0, 32], sizes = [16, 32], strides = [1, 1]} : vector<16x96xf32> to vector<16x32xf32>
    %35 = arith.truncf %34 : vector<16x32xf32> to vector<16x32xbf16>
    %c0_16 = arith.constant 0 : index
    %c0_17 = arith.constant 0 : index
    %36 = vector.load %arg7[%c0_16, %c0_17] : memref<16x32xbf16, #tpu.memory_space<vmem>>, vector<16x32xbf16>
    tpu.vector_store %arg7[%c0_16, %c0_17], %35 {strides = array<i32>} : memref<16x32xbf16, #tpu.memory_space<vmem>>, vector<16x32xbf16>,
    %37 = vector.extract_strided_slice %30 {offsets = [0, 64], sizes = [16, 32], strides = [1, 1]} : vector<16x96xf32> to vector<16x32xf32>
    %38 = arith.truncf %37 : vector<16x32xf32> to vector<16x32xbf16>
    %c0_18 = arith.constant 0 : index
    %c0_19 = arith.constant 0 : index
    %39 = vector.load %arg8[%c0_18, %c0_19] : memref<16x32xbf16, #tpu.memory_space<vmem>>, vector<16x32xbf16>
    tpu.vector_store %arg8[%c0_18, %c0_19], %38 {strides = array<i32>} : memref<16x32xbf16, #tpu.memory_space<vmem>>, vector<16x32xbf16>,
    return
  }
  func.func @transform_0(%arg0: i32) -> (i32, i32) {
    %c0_i32 = arith.constant 0 : i32
    %c0_i32_0 = arith.constant 0 : i32
    return %arg0, %c0_i32 : i32, i32
  }
  func.func @transform_1(%arg0: i32) -> (i32, i32) {
    %c0_i32 = arith.constant 0 : i32
    %c0_i32_0 = arith.constant 0 : i32
    %c0_i32_1 = arith.constant 0 : i32
    return %c0_i32, %c0_i32_0 : i32, i32
  }
  func.func @transform_2(%arg0: i32) -> (i32, i32) {
    %c0_i32 = arith.constant 0 : i32
    %c0_i32_0 = arith.constant 0 : i32
    %c0_i32_1 = arith.constant 0 : i32
    return %c0_i32, %c0_i32_0 : i32, i32
  }
  func.func @transform_3(%arg0: i32) -> (i32, i32) {
    %c0_i32 = arith.constant 0 : i32
    %c0_i32_0 = arith.constant 0 : i32
    %c0_i32_1 = arith.constant 0 : i32
    return %c0_i32, %c0_i32_0 : i32, i32
  }
  func.func @transform_4(%arg0: i32) -> (i32, i32) {
    %c0_i32 = arith.constant 0 : i32
    %c0_i32_0 = arith.constant 0 : i32
    %c0_i32_1 = arith.constant 0 : i32
    return %c0_i32, %c0_i32_0 : i32, i32
  }
  func.func @transform_5(%arg0: i32) -> (i32, i32) {
    %c0_i32 = arith.constant 0 : i32
    %c0_i32_0 = arith.constant 0 : i32
    return %arg0, %c0_i32 : i32, i32
  }
  func.func @transform_6(%arg0: i32) -> (i32, i32) {
    %c0_i32 = arith.constant 0 : i32
    %c0_i32_0 = arith.constant 0 : i32
    return %arg0, %c0_i32 : i32, i32
  }
  func.func @transform_7(%arg0: i32) -> (i32, i32) {
    %c0_i32 = arith.constant 0 : i32
    %c0_i32_0 = arith.constant 0 : i32
    return %arg0, %c0_i32 : i32, i32
  }
}

</mosaic_0001>

<llo_original>
// kernel: tpu_custom_call.1
$region0: #{tpu_custom_call.1}
  #allocation0 [shape = 'u32[]', space=smem, size = 0x4, offset = 0x4, fixed_abs, tag = 'smem constant byte address 0x4 - core index']
  #allocation1 [shape = 'u32[72,128]{1,0:T(1,128)}', space=vmem, size = 0x9000, scoped, tag = 'internal scratch']
  %s0 = inlined_call_operand.hbm [shape: f32[16,32], index: 0, kind: input, shape index: {}]
  %s1 = inlined_call_operand.hbm [shape: f32[1,32], index: 1, kind: input, shape index: {}]
  %s2 = inlined_call_operand.vmem [shape: f32[1,32], index: 2, kind: input, shape index: {}]
  %s3 = inlined_call_operand.hbm [shape: bf16[32,96], index: 3, kind: input, shape index: {}]
  %s4 = inlined_call_operand.vmem [shape: f32[1,96], index: 4, kind: input, shape index: {}]
  %s5 = inlined_call_operand.hbm [shape: bf16[16,32], index: 5, kind: output, shape index: {0}]
  %s6 = inlined_call_operand.hbm [shape: bf16[16,32], index: 6, kind: output, shape index: {1}]
  %s7 = inlined_call_operand.hbm [shape: bf16[16,32], index: 7, kind: output, shape index: {2}]
  %8 = xla_tuple %s5, %s6, %s7
  %s9 = sld [smem:[#allocation0]]
  $region58: #{tpu_custom_call.1} parent=0
    _
  %s11 = ssub.s32 1, %s9
  %s12 = scalar_select 0, %s11, %s9
  $region1: #{tpu_custom_call.1} parent=0
    #allocation2 [shape = 'u8[8192]{0}', space=vmem, size = 0x2000, scoped, tag = 'input window, operand 0, single buffered']
    #allocation3 [shape = 's32[1]{0}', space=sflag, size = 0x4, scoped, tag = 'scoped memory for tpu_custom_call.1']
    #allocation4 [shape = 's32[1]{0}', space=sflag, size = 0x4, scoped, tag = 'scoped memory for tpu_custom_call.1']
    #allocation5 [shape = 'u8[512]{0}', space=vmem, size = 0x400, scoped, tag = 'input window, operand 1, single buffered']
    #allocation6 [shape = 's32[1]{0}', space=sflag, size = 0x4, scoped, tag = 'scoped memory for tpu_custom_call.1']
    #allocation7 [shape = 'u8[8192]{0}', space=vmem, size = 0x2000, scoped, tag = 'input window, operand 3, single buffered']
    #allocation8 [shape = 'u8[4096]{0}', space=vmem, size = 0x1000, scoped, tag = 'output window, operand 0, single buffered']
    #allocation9 [shape = 'u8[4096]{0}', space=vmem, size = 0x1000, scoped, tag = 'output window, operand 1, single buffered']
    #allocation10 [shape = 's32[1]{0}', space=sflag, size = 0x4, scoped, tag = 'scoped memory for tpu_custom_call.1']
    #allocation11 [shape = 'u8[4096]{0}', space=vmem, size = 0x1000, scoped, tag = 'output window, operand 2, single buffered']
    %13 = vsyncpa [#allocation3], 0
    %14 = vsyncpa [#allocation6], 0
    %15 = vsyncpa [#allocation4], 0
    %16 = vsyncpa [#allocation10], 0
    // Predicated region
    $region2: #{tpu_custom_call.1} parent=1 // pred_check
      _
    $region3: #{tpu_custom_call.1} parent=1 // pred_check_branch
      %18 = sbr.rel (0) target = $region5
    $region4: #{tpu_custom_call.1} parent=1 // pred_region
      %20 = vsyncadd [#allocation3], 0
      %s21 = sshll.u32 %s0, 4
      %s22 = int_to_ptr.hbm [resolvable:$true] %s21
      %s23 = sshll.u32 [#allocation2], 4
      %s24 = int_to_ptr.vmem [resolvable:$true] %s23
      %29 = dma.hbm_to_vmem [thread:$0]  %s22, 256, %s24, [#allocation3], 128, 128, 8
    $region5: #{tpu_custom_call.1} parent=1 // pred_fallthru
      _
    // Predicated region
    $region6: #{tpu_custom_call.1} parent=1 // pred_check
      _
    $region7: #{tpu_custom_call.1} parent=1 // pred_check_branch
      %31 = sbr.rel (0) target = $region9
    $region8: #{tpu_custom_call.1} parent=1 // pred_region
      %33 = vsyncadd [#allocation6], 0
      %s35 = sshll.u32 %s1, 4
      %s36 = int_to_ptr.hbm [resolvable:$true] %s35
      %s37 = sshll.u32 [#allocation5], 4
      %s38 = int_to_ptr.vmem [resolvable:$true] %s37
      %40 = dma.hbm_to_vmem [thread:$0]  %s36, 16, %s38, [#allocation6]
    $region9: #{tpu_custom_call.1} parent=1 // pred_fallthru
      _
    // Predicated region
    $region10: #{tpu_custom_call.1} parent=1 // pred_check
      _
    $region11: #{tpu_custom_call.1} parent=1 // pred_check_branch
      %42 = sbr.rel (0) target = $region13
    $region12: #{tpu_custom_call.1} parent=1 // pred_region
      _
    $region13: #{tpu_custom_call.1} parent=1 // pred_fallthru
      _
    // Predicated region
    $region14: #{tpu_custom_call.1} parent=1 // pred_check
      _
    $region15: #{tpu_custom_call.1} parent=1 // pred_check_branch
      %44 = sbr.rel (0) target = $region17
    $region16: #{tpu_custom_call.1} parent=1 // pred_region
      %46 = vsyncadd [#allocation6], 0
      %s47 = sshll.u32 %s3, 4
      %s48 = int_to_ptr.hbm [resolvable:$true] %s47
      %s49 = sshll.u32 [#allocation7], 4
      %s50 = int_to_ptr.vmem [resolvable:$true] %s49
      %55 = dma.hbm_to_vmem [thread:$0]  %s48, 256, %s50, [#allocation6], 64, 64, 4
    $region17: #{tpu_custom_call.1} parent=1 // pred_fallthru
      _
    // Predicated region
    $region18: #{tpu_custom_call.1} parent=1 // pred_check
      _
    $region19: #{tpu_custom_call.1} parent=1 // pred_check_branch
      %57 = sbr.rel (0) target = $region21
    $region20: #{tpu_custom_call.1} parent=1 // pred_region
      _
    $region21: #{tpu_custom_call.1} parent=1 // pred_fallthru
      _
    // Predicated region
    $region22: #{tpu_custom_call.1} parent=1 // pred_check
      _
    $region23: #{tpu_custom_call.1} parent=1 // pred_check_branch
      %59 = sbr.rel (0) target = $region25
    $region24: #{tpu_custom_call.1} parent=1 // pred_region
      %61 = dma.done [#allocation3], 256
    $region25: #{tpu_custom_call.1} parent=1 // pred_fallthru
      _
    // Predicated region
    $region26: #{tpu_custom_call.1} parent=1 // pred_check
      _
    $region27: #{tpu_custom_call.1} parent=1 // pred_check_branch
      %63 = sbr.rel (0) target = $region29
    $region28: #{tpu_custom_call.1} parent=1 // pred_region
      %65 = dma.done [#allocation6], 16
    $region29: #{tpu_custom_call.1} parent=1 // pred_fallthru
      _
    // Predicated region
    $region30: #{tpu_custom_call.1} parent=1 // pred_check
      _
    $region31: #{tpu_custom_call.1} parent=1 // pred_check_branch
      %67 = sbr.rel (0) target = $region33
    $region32: #{tpu_custom_call.1} parent=1 // pred_region
      %69 = dma.done [#allocation6], 256
    $region33: #{tpu_custom_call.1} parent=1 // pred_fallthru
      _
    %v71 = vld [vmem:[#allocation2] sm:$0xff]
    %v72 = vld [vmem:[#allocation2 + $0x8] sm:$0xff]
    %vm73 = vcmask 261120
    %v74 = vsel %vm73, %v71, 0.0
    %75 = vadd.xlane.f32.xlu0 %v74
    %v76 = vpop.xlane.xlu0 %75
    %v77 = vsel %vm73, %v72, 0.0
    %78 = vadd.xlane.f32.xlu0 %v77
    %v79 = vpop.xlane.xlu0 %78
    %v80 = vrcp.pop 32.0
    %v81 = vmul.f32 32.0, %v80
    %v82 = vsub.f32 1.0, %v81
    %v83 = vmul.f32 %v80, %v82
    %v84 = vadd.f32 %v80, %v83
    %vm85 = vweird.f32 %v80
    %v86 = vsel %vm85, %v80, %v84
    %v87 = vmul.f32 %v76, %v86
    %v88 = vmul.f32 %v79, %v86
    %v89 = vsub.f32 %v71, %v87
    %v90 = vsub.f32 %v72, %v88
    %v91 = vmul.f32 %v89, %v89
    %v92 = vmul.f32 %v90, %v90
    %v93 = vsel %vm73, %v91, 0.0
    %94 = vadd.xlane.f32.xlu0 %v93
    %v95 = vpop.xlane.xlu0 %94
    %v96 = vsel %vm73, %v92, 0.0
    %97 = vadd.xlane.f32.xlu0 %v96
    %v98 = vpop.xlane.xlu0 %97
    %v99 = vmul.f32 %v95, %v86
    %v100 = vmul.f32 %v98, %v86
    %v101 = vadd.f32 %v99, 1e-05
    %v102 = vadd.f32 %v100, 1e-05
    %v103 = vrsqrt.pop %v101
    %v104 = vmul.f32 %v103, %v101
    %v105 = vmul.f32 %v104, %v103
    %v106 = vmul.f32 0.5, %v105
    %v107 = vsub.f32 1.5, %v106
    %v108 = vmul.f32 %v103, %v107
    %vm109 = vweird.f32 %v101
    %vm110 = vweird.f32 %v103
    %vm111 = vmor %vm109, %vm110
    %v112 = vsel %vm111, %v103, %v108
    %v113 = vrsqrt.pop %v102
    %v114 = vmul.f32 %v113, %v102
    %v115 = vmul.f32 %v114, %v113
    %v116 = vmul.f32 0.5, %v115
    %v117 = vsub.f32 1.5, %v116
    %v118 = vmul.f32 %v113, %v117
    %vm119 = vweird.f32 %v102
    %vm120 = vweird.f32 %v113
    %vm121 = vmor %vm119, %vm120
    %v122 = vsel %vm121, %v113, %v118
    %v123 = vmul.f32 %v89, %v112
    %v124 = vmul.f32 %v90, %v122
    %v125 = vld [vmem:[#allocation5] sm:$0x1]
    %v127 = vperm.slane %v125, 0
    %v129 = vmul.f32 %v123, %v127
    %v130 = vmul.f32 %v124, %v127
    %v131 = vld [vmem:[%s2] sm:$0x1]
    %v133 = vperm.slane %v131, 0
    %v135 = vadd.f32 %v129, %v133
    %v136 = vadd.f32 %v130, %v133
    %v137 = vpack.c.bf16 %v136, %v135
    %v138 = vld [vmem:[#allocation7] sm:$0xf]
    %v139 = vld [vmem:[#allocation7 + $0x4] sm:$0xf]
    %v140 = vld [vmem:[#allocation7 + $0x8] sm:$0xf]
    %v141 = vld [vmem:[#allocation7 + $0xc] sm:$0xf]
    %v142 = vld [vmem:[%s4] sm:$0x1]
    %v144 = vperm.slane %v142, 0
    %v150 = vunpack.c.l.b16 %v138
    %v151 = vunpack.c.l.b16 %v139
    %v152 = vunpack.c.l.b16 %v140
    %v153 = vunpack.c.l.b16 %v141
    %v154 = vpack.c.b16 %v151, %v150
    %v155 = vpack.c.b16 %v153, %v152
    %v159 = vsel %vm73, %v137, 0
    %161 = vmatpush.bf16.msra.mxu0 0
    %162 = vmatpush.bf16.msra.mxu0 0
    %163 = vmatpush.bf16.msra.mxu0 0
    %164 = vmatpush.bf16.msra.mxu0 0
    %165 = vmatpush.bf16.msra.mxu0 0
    %166 = vmatpush.bf16.msra.mxu0 0
    %167 = vmatpush.bf16.msra.mxu0 %v155
    %168 = vmatpush.bf16.msra.mxu0 %v154
    %169 = vmatmul.bf16.gmra.mxu0 %v159
    %v170 = vpop.f32.mrf.mxu0
    %v171 = vadd.f32 %v144, %v170
    %v172 = vpop.f32.mrf.mxu0
    %v173 = vadd.f32 %v144, %v172
    %174 = vdwg.mxu0
    %v175 = vpack.c.bf16 %v171, %v171
    %v176 = vpack.c.bf16 %v173, %v173
    %vm177 = vcmask 257024
    %178 = vst.msk [vmem:[#allocation8] sm:$0xf] %vm177, %v175
    %179 = vst.msk [vmem:[#allocation8 + $0x4] sm:$0xf] %vm177, %v176
    %182 = vrot.lane.b32.xlu0 %v175, 96
    %v183 = vpop.permute.xlu0 %182
    %184 = vrot.lane.b32.xlu0 %v176, 96
    %v185 = vpop.permute.xlu0 %184
    %188 = vst.msk [vmem:[#allocation9] sm:$0xf] %vm177, %v183
    %189 = vst.msk [vmem:[#allocation9 + $0x4] sm:$0xf] %vm177, %v185
    %190 = vrot.lane.b32.xlu0 %v175, 64
    %v191 = vpop.permute.xlu0 %190
    %192 = vrot.lane.b32.xlu0 %v176, 64
    %v193 = vpop.permute.xlu0 %192
    %196 = vst.msk [vmem:[#allocation11] sm:$0xf] %vm177, %v191
    %197 = vst.msk [vmem:[#allocation11 + $0x4] sm:$0xf] %vm177, %v193
    // Predicated region
    $region34: #{tpu_custom_call.1} parent=1 // pred_check
      _
    $region35: #{tpu_custom_call.1} parent=1 // pred_check_branch
      %199 = sbr.rel (0) target = $region37
    $region36: #{tpu_custom_call.1} parent=1 // pred_region
      %201 = vsyncadd [#allocation4], 0
      %s202 = sshll.u32 [#allocation8], 4
      %s203 = int_to_ptr.vmem [resolvable:$true] %s202
      %s204 = sshll.u32 %s5, 4
      %s205 = int_to_ptr.hbm [resolvable:$true] %s204
      %210 = dma.vmem_to_hbm [thread:$0]  %s203, 128, %s205, [#allocation4], 64, 64, 4
    $region37: #{tpu_custom_call.1} parent=1 // pred_fallthru
      _
    // Predicated region
    $region38: #{tpu_custom_call.1} parent=1 // pred_check
      _
    $region39: #{tpu_custom_call.1} parent=1 // pred_check_branch
      %212 = sbr.rel (0) target = $region41
    $region40: #{tpu_custom_call.1} parent=1 // pred_region
      %214 = vsyncadd [#allocation10], 0
      %s215 = sshll.u32 [#allocation9], 4
      %s216 = int_to_ptr.vmem [resolvable:$true] %s215
      %s217 = sshll.u32 %s6, 4
      %s218 = int_to_ptr.hbm [resolvable:$true] %s217
      %223 = dma.vmem_to_hbm [thread:$0]  %s216, 128, %s218, [#allocation10], 64, 64, 4
    $region41: #{tpu_custom_call.1} parent=1 // pred_fallthru
      _
    // Predicated region
    $region42: #{tpu_custom_call.1} parent=1 // pred_check
      _
    $region43: #{tpu_custom_call.1} parent=1 // pred_check_branch
      %225 = sbr.rel (0) target = $region45
    $region44: #{tpu_custom_call.1} parent=1 // pred_region
      %227 = vsyncadd [#allocation10], 0
      %s228 = sshll.u32 [#allocation11], 4
      %s229 = int_to_ptr.vmem [resolvable:$true] %s228
      %s230 = sshll.u32 %s7, 4
      %s231 = int_to_ptr.hbm [resolvable:$true] %s230
      %236 = dma.vmem_to_hbm [thread:$0]  %s229, 128, %s231, [#allocation10], 64, 64, 4
    $region45: #{tpu_custom_call.1} parent=1 // pred_fallthru
      _
    // Predicated region
    $region46: #{tpu_custom_call.1} parent=1 // pred_check
      _
    $region47: #{tpu_custom_call.1} parent=1 // pred_check_branch
      %238 = sbr.rel (0) target = $region49
    $region48: #{tpu_custom_call.1} parent=1 // pred_region
      %240 = dma.done [#allocation4], 128
    $region49: #{tpu_custom_call.1} parent=1 // pred_fallthru
      _
    // Predicated region
    $region50: #{tpu_custom_call.1} parent=1 // pred_check
      _
    $region51: #{tpu_custom_call.1} parent=1 // pred_check_branch
      %242 = sbr.rel (0) target = $region53
    $region52: #{tpu_custom_call.1} parent=1 // pred_region
      %244 = dma.done [#allocation10], 128
    $region53: #{tpu_custom_call.1} parent=1 // pred_fallthru
      _
    // Predicated region
    $region54: #{tpu_custom_call.1} parent=1 // pred_check
      _
    $region55: #{tpu_custom_call.1} parent=1 // pred_check_branch
      %246 = sbr.rel (0) target = $region57
    $region56: #{tpu_custom_call.1} parent=1 // pred_region
      %248 = dma.done [#allocation10], 128
    $region57: #{tpu_custom_call.1} parent=1 // pred_fallthru
      _
    %249 = vsyncpa [#allocation3], 1
    %250 = vsyncpa [#allocation6], 1
    %251 = vsyncpa [#allocation4], 1
    %252 = vsyncpa [#allocation10], 1

// kernel: tpu_custom_call.1
$region0: #{tpu_custom_call.1}
  #allocation0 [shape = 'u32[]', space=smem, size = 0x4, offset = 0x4, fixed_abs, tag = 'smem constant byte address 0x4 - core index']
  #allocation1 [shape = 'u32[72,128]{1,0:T(1,128)}', space=vmem, size = 0x9000, scoped, tag = 'internal scratch']
  %s0 = inlined_call_operand.hbm [shape: f32[16,32], index: 0, kind: input, shape index: {}]
  %s1 = inlined_call_operand.hbm [shape: f32[1,32], index: 1, kind: input, shape index: {}]
  %s2 = inlined_call_operand.vmem [shape: f32[1,32], index: 2, kind: input, shape index: {}]
  %s3 = inlined_call_operand.hbm [shape: bf16[32,96], index: 3, kind: input, shape index: {}]
  %s4 = inlined_call_operand.vmem [shape: f32[1,96], index: 4, kind: input, shape index: {}]
  %s5 = inlined_call_operand.hbm [shape: bf16[16,32], index: 5, kind: output, shape index: {0}]
  %s6 = inlined_call_operand.hbm [shape: bf16[16,32], index: 6, kind: output, shape index: {1}]
  %s7 = inlined_call_operand.hbm [shape: bf16[16,32], index: 7, kind: output, shape index: {2}]
  %8 = xla_tuple %s5, %s6, %s7
  %s9 = sld [smem:[#allocation0]]
  $region58: #{tpu_custom_call.1} parent=0
    _
  %s11 = ssub.s32 1, %s9
  %s12 = scalar_select 0, %s11, %s9
  $region1: #{tpu_custom_call.1} parent=0
    #allocation2 [shape = 'u8[8192]{0}', space=vmem, size = 0x2000, scoped, tag = 'input window, operand 0, single buffered']
    #allocation3 [shape = 's32[1]{0}', space=sflag, size = 0x4, scoped, tag = 'scoped memory for tpu_custom_call.1']
    #allocation4 [shape = 's32[1]{0}', space=sflag, size = 0x4, scoped, tag = 'scoped memory for tpu_custom_call.1']
    #allocation5 [shape = 'u8[512]{0}', space=vmem, size = 0x400, scoped, tag = 'input window, operand 1, single buffered']
    #allocation6 [shape = 's32[1]{0}', space=sflag, size = 0x4, scoped, tag = 'scoped memory for tpu_custom_call.1']
    #allocation7 [shape = 'u8[8192]{0}', space=vmem, size = 0x2000, scoped, tag = 'input window, operand 3, single buffered']
    #allocation8 [shape = 'u8[4096]{0}', space=vmem, size = 0x1000, scoped, tag = 'output window, operand 0, single buffered']
    #allocation9 [shape = 'u8[4096]{0}', space=vmem, size = 0x1000, scoped, tag = 'output window, operand 1, single buffered']
    #allocation10 [shape = 's32[1]{0}', space=sflag, size = 0x4, scoped, tag = 'scoped memory for tpu_custom_call.1']
    #allocation11 [shape = 'u8[4096]{0}', space=vmem, size = 0x1000, scoped, tag = 'output window, operand 2, single buffered']
    %13 = vsyncpa [#allocation3], 0
    %14 = vsyncpa [#allocation6], 0
    %15 = vsyncpa [#allocation4], 0
    %16 = vsyncpa [#allocation10], 0
    // Predicated region
    $region2: #{tpu_custom_call.1} parent=1 // pred_check
      _
    $region3: #{tpu_custom_call.1} parent=1 // pred_check_branch
      %18 = sbr.rel (0) target = $region5
    $region4: #{tpu_custom_call.1} parent=1 // pred_region
      %20 = vsyncadd [#allocation3], 0
      %s21 = sshll.u32 %s0, 4
      %s22 = int_to_ptr.hbm [resolvable:$true] %s21
      %s23 = sshll.u32 [#allocation2], 4
      %s24 = int_to_ptr.vmem [resolvable:$true] %s23
      %29 = dma.hbm_to_vmem [thread:$0]  %s22, 256, %s24, [#allocation3], 128, 128, 8
    $region5: #{tpu_custom_call.1} parent=1 // pred_fallthru
      _
    // Predicated region
    $region6: #{tpu_custom_call.1} parent=1 // pred_check
      _
    $region7: #{tpu_custom_call.1} parent=1 // pred_check_branch
      %31 = sbr.rel (0) target = $region9
    $region8: #{tpu_custom_call.1} parent=1 // pred_region
      %33 = vsyncadd [#allocation6], 0
      %s35 = sshll.u32 %s1, 4
      %s36 = int_to_ptr.hbm [resolvable:$true] %s35
      %s37 = sshll.u32 [#allocation5], 4
      %s38 = int_to_ptr.vmem [resolvable:$true] %s37
      %40 = dma.hbm_to_vmem [thread:$0]  %s36, 16, %s38, [#allocation6]
    $region9: #{tpu_custom_call.1} parent=1 // pred_fallthru
      _
    // Predicated region
    $region10: #{tpu_custom_call.1} parent=1 // pred_check
      _
    $region11: #{tpu_custom_call.1} parent=1 // pred_check_branch
      %42 = sbr.rel (0) target = $region13
    $region12: #{tpu_custom_call.1} parent=1 // pred_region
      _
    $region13: #{tpu_custom_call.1} parent=1 // pred_fallthru
      _
    // Predicated region
    $region14: #{tpu_custom_call.1} parent=1 // pred_check
      _
    $region15: #{tpu_custom_call.1} parent=1 // pred_check_branch
      %44 = sbr.rel (0) target = $region17
    $region16: #{tpu_custom_call.1} parent=1 // pred_region
      %46 = vsyncadd [#allocation6], 0
      %s47 = sshll.u32 %s3, 4
      %s48 = int_to_ptr.hbm [resolvable:$true] %s47
      %s49 = sshll.u32 [#allocation7], 4
      %s50 = int_to_ptr.vmem [resolvable:$true] %s49
      %55 = dma.hbm_to_vmem [thread:$0]  %s48, 256, %s50, [#allocation6], 64, 64, 4
    $region17: #{tpu_custom_call.1} parent=1 // pred_fallthru
      _
    // Predicated region
    $region18: #{tpu_custom_call.1} parent=1 // pred_check
      _
    $region19: #{tpu_custom_call.1} parent=1 // pred_check_branch
      %57 = sbr.rel (0) target = $region21
    $region20: #{tpu_custom_call.1} parent=1 // pred_region
      _
    $region21: #{tpu_custom_call.1} parent=1 // pred_fallthru
      _
    // Predicated region
    $region22: #{tpu_custom_call.1} parent=1 // pred_check
      _
    $region23: #{tpu_custom_call.1} parent=1 // pred_check_branch
      %59 = sbr.rel (0) target = $region25
    $region24: #{tpu_custom_call.1} parent=1 // pred_region
      %61 = dma.done [#allocation3], 256
    $region25: #{tpu_custom_call.1} parent=1 // pred_fallthru
      _
    // Predicated region
    $region26: #{tpu_custom_call.1} parent=1 // pred_check
      _
    $region27: #{tpu_custom_call.1} parent=1 // pred_check_branch
      %63 = sbr.rel (0) target = $region29
    $region28: #{tpu_custom_call.1} parent=1 // pred_region
      %65 = dma.done [#allocation6], 16
    $region29: #{tpu_custom_call.1} parent=1 // pred_fallthru
      _
    // Predicated region
    $region30: #{tpu_custom_call.1} parent=1 // pred_check
      _
    $region31: #{tpu_custom_call.1} parent=1 // pred_check_branch
      %67 = sbr.rel (0) target = $region33
    $region32: #{tpu_custom_call.1} parent=1 // pred_region
      %69 = dma.done [#allocation6], 256
    $region33: #{tpu_custom_call.1} parent=1 // pred_fallthru
      _
    %v71 = vld [vmem:[#allocation2] sm:$0xff]
    %v72 = vld [vmem:[#allocation2 + $0x8] sm:$0xff]
    %vm73 = vcmask 261120
    %v74 = vsel %vm73, %v71, 0.0
    %75 = vadd.xlane.f32.xlu0 %v74
    %v76 = vpop.xlane.xlu0 %75
    %v77 = vsel %vm73, %v72, 0.0
    %78 = vadd.xlane.f32.xlu0 %v77
    %v79 = vpop.xlane.xlu0 %78
    %v80 = vrcp.pop 32.0
    %v81 = vmul.f32 32.0, %v80
    %v82 = vsub.f32 1.0, %v81
    %v83 = vmul.f32 %v80, %v82
    %v84 = vadd.f32 %v80, %v83
    %vm85 = vweird.f32 %v80
    %v86 = vsel %vm85, %v80, %v84
    %v87 = vmul.f32 %v76, %v86
    %v88 = vmul.f32 %v79, %v86
    %v89 = vsub.f32 %v71, %v87
    %v90 = vsub.f32 %v72, %v88
    %v91 = vmul.f32 %v89, %v89
    %v92 = vmul.f32 %v90, %v90
    %v93 = vsel %vm73, %v91, 0.0
    %94 = vadd.xlane.f32.xlu0 %v93
    %v95 = vpop.xlane.xlu0 %94
    %v96 = vsel %vm73, %v92, 0.0
    %97 = vadd.xlane.f32.xlu0 %v96
    %v98 = vpop.xlane.xlu0 %97
    %v99 = vmul.f32 %v95, %v86
    %v100 = vmul.f32 %v98, %v86
    %v101 = vadd.f32 %v99, 1e-05
    %v102 = vadd.f32 %v100, 1e-05
    %v103 = vrsqrt.pop %v101
    %v104 = vmul.f32 %v103, %v101
    %v105 = vmul.f32 %v104, %v103
    %v106 = vmul.f32 0.5, %v105
    %v107 = vsub.f32 1.5, %v106
    %v108 = vmul.f32 %v103, %v107
    %vm109 = vweird.f32 %v101
    %vm110 = vweird.f32 %v103
    %vm111 = vmor %vm109, %vm110
    %v112 = vsel %vm111, %v103, %v108
    %v113 = vrsqrt.pop %v102
    %v114 = vmul.f32 %v113, %v102
    %v115 = vmul.f32 %v114, %v113
    %v116 = vmul.f32 0.5, %v115
    %v117 = vsub.f32 1.5, %v116
    %v118 = vmul.f32 %v113, %v117
    %vm119 = vweird.f32 %v102
    %vm120 = vweird.f32 %v113
    %vm121 = vmor %vm119, %vm120
    %v122 = vsel %vm121, %v113, %v118
    %v123 = vmul.f32 %v89, %v112
    %v124 = vmul.f32 %v90, %v122
    %v125 = vld [vmem:[#allocation5] sm:$0x1]
    %v127 = vperm.slane %v125, 0
    %v129 = vmul.f32 %v123, %v127
    %v130 = vmul.f32 %v124, %v127
    %v131 = vld [vmem:[%s2] sm:$0x1]
    %v133 = vperm.slane %v131, 0
    %v135 = vadd.f32 %v129, %v133
    %v136 = vadd.f32 %v130, %v133
    %v137 = vpack.c.bf16 %v136, %v135
    %v138 = vld [vmem:[#allocation7] sm:$0xf]
    %v139 = vld [vmem:[#allocation7 + $0x4] sm:$0xf]
    %v140 = vld [vmem:[#allocation7 + $0x8] sm:$0xf]
    %v141 = vld [vmem:[#allocation7 + $0xc] sm:$0xf]
    %v142 = vld [vmem:[%s4] sm:$0x1]
    %v144 = vperm.slane %v142, 0
    %v150 = vunpack.c.l.b16 %v138
    %v151 = vunpack.c.l.b16 %v139
    %v152 = vunpack.c.l.b16 %v140
    %v153 = vunpack.c.l.b16 %v141
    %v154 = vpack.c.b16 %v151, %v150
    %v155 = vpack.c.b16 %v153, %v152
    %v159 = vsel %vm73, %v137, 0
    %161 = vmatpush.bf16.msra.mxu0 0
    %162 = vmatpush.bf16.msra.mxu0 0
    %163 = vmatpush.bf16.msra.mxu0 0
    %164 = vmatpush.bf16.msra.mxu0 0
    %165 = vmatpush.bf16.msra.mxu0 0
    %166 = vmatpush.bf16.msra.mxu0 0
    %167 = vmatpush.bf16.msra.mxu0 %v155
    %168 = vmatpush.bf16.msra.mxu0 %v154
    %169 = vmatmul.bf16.gmra.mxu0 %v159
    %v170 = vpop.f32.mrf.mxu0
    %v171 = vadd.f32 %v144, %v170
    %v172 = vpop.f32.mrf.mxu0
    %v173 = vadd.f32 %v144, %v172
    %174 = vdwg.mxu0
    %v175 = vpack.c.bf16 %v171, %v171
    %v176 = vpack.c.bf16 %v173, %v173
    %vm177 = vcmask 257024
    %178 = vst.msk [vmem:[#allocation8] sm:$0xf] %vm177, %v175
    %179 = vst.msk [vmem:[#allocation8 + $0x4] sm:$0xf] %vm177, %v176
    %182 = vrot.lane.b32.xlu0 %v175, 96
    %v183 = vpop.permute.xlu0 %182
    %184 = vrot.lane.b32.xlu0 %v176, 96
    %v185 = vpop.permute.xlu0 %184
    %188 = vst.msk [vmem:[#allocation9] sm:$0xf] %vm177, %v183
    %189 = vst.msk [vmem:[#allocation9 + $0x4] sm:$0xf] %vm177, %v185
    %190 = vrot.lane.b32.xlu0 %v175, 64
    %v191 = vpop.permute.xlu0 %190
    %192 = vrot.lane.b32.xlu0 %v176, 64
    %v193 = vpop.permute.xlu0 %192
    %196 = vst.msk [vmem:[#allocation11] sm:$0xf] %vm177, %v191
    %197 = vst.msk [vmem:[#allocation11 + $0x4] sm:$0xf] %vm177, %v193
    // Predicated region
    $region34: #{tpu_custom_call.1} parent=1 // pred_check
      _
    $region35: #{tpu_custom_call.1} parent=1 // pred_check_branch
      %199 = sbr.rel (0) target = $region37
    $region36: #{tpu_custom_call.1} parent=1 // pred_region
      %201 = vsyncadd [#allocation4], 0
      %s202 = sshll.u32 [#allocation8], 4
      %s203 = int_to_ptr.vmem [resolvable:$true] %s202
      %s204 = sshll.u32 %s5, 4
      %s205 = int_to_ptr.hbm [resolvable:$true] %s204
      %210 = dma.vmem_to_hbm [thread:$0]  %s203, 128, %s205, [#allocation4], 64, 64, 4
    $region37: #{tpu_custom_call.1} parent=1 // pred_fallthru
      _
    // Predicated region
    $region38: #{tpu_custom_call.1} parent=1 // pred_check
      _
    $region39: #{tpu_custom_call.1} parent=1 // pred_check_branch
      %212 = sbr.rel (0) target = $region41
    $region40: #{tpu_custom_call.1} parent=1 // pred_region
      %214 = vsyncadd [#allocation10], 0
      %s215 = sshll.u32 [#allocation9], 4
      %s216 = int_to_ptr.vmem [resolvable:$true] %s215
      %s217 = sshll.u32 %s6, 4
      %s218 = int_to_ptr.hbm [resolvable:$true] %s217
      %223 = dma.vmem_to_hbm [thread:$0]  %s216, 128, %s218, [#allocation10], 64, 64, 4
    $region41: #{tpu_custom_call.1} parent=1 // pred_fallthru
      _
    // Predicated region
    $region42: #{tpu_custom_call.1} parent=1 // pred_check
      _
    $region43: #{tpu_custom_call.1} parent=1 // pred_check_branch
      %225 = sbr.rel (0) target = $region45
    $region44: #{tpu_custom_call.1} parent=1 // pred_region
      %227 = vsyncadd [#allocation10], 0
      %s228 = sshll.u32 [#allocation11], 4
      %s229 = int_to_ptr.vmem [resolvable:$true] %s228
      %s230 = sshll.u32 %s7, 4
      %s231 = int_to_ptr.hbm [resolvable:$true] %s230
      %236 = dma.vmem_to_hbm [thread:$0]  %s229, 128, %s231, [#allocation10], 64, 64, 4
    $region45: #{tpu_custom_call.1} parent=1 // pred_fallthru
      _
    // Predicated region
    $region46: #{tpu_custom_call.1} parent=1 // pred_check
      _
    $region47: #{tpu_custom_call.1} parent=1 // pred_check_branch
      %238 = sbr.rel (0) target = $region49
    $region48: #{tpu_custom_call.1} parent=1 // pred_region
      %240 = dma.done [#allocation4], 128
    $region49: #{tpu_custom_call.1} parent=1 // pred_fallthru
      _
    // Predicated region
    $region50: #{tpu_custom_call.1} parent=1 // pred_check
      _
    $region51: #{tpu_custom_call.1} parent=1 // pred_check_branch
      %242 = sbr.rel (0) target = $region53
    $region52: #{tpu_custom_call.1} parent=1 // pred_region
      %244 = dma.done [#allocation10], 128
    $region53: #{tpu_custom_call.1} parent=1 // pred_fallthru
      _
    // Predicated region
    $region54: #{tpu_custom_call.1} parent=1 // pred_check
      _
    $region55: #{tpu_custom_call.1} parent=1 // pred_check_branch
      %246 = sbr.rel (0) target = $region57
    $region56: #{tpu_custom_call.1} parent=1 // pred_region
      %248 = dma.done [#allocation10], 128
    $region57: #{tpu_custom_call.1} parent=1 // pred_fallthru
      _
    %249 = vsyncpa [#allocation3], 1
    %250 = vsyncpa [#allocation6], 1
    %251 = vsyncpa [#allocation4], 1
    %252 = vsyncpa [#allocation10], 1

</llo_original>
